<compile_context>
chip_gen: v6e
topology: v6e:2x2x1
jax: 0.10.0
libtpu: 0.0.40
codegen_flags: <defaults>
</compile_context>

<pallas_src>
import functools

import jax
import jax.numpy as jnp
import numpy as np
from jax import lax
from jax.experimental import pallas as pl
from jax.experimental.pallas import tpu as pltpu

EPS = 1e-5


# --------------------------------------------------------------------------
# Kernels (channel-major: blocks are [Cr, TS] with TS a multiple of 128)
# --------------------------------------------------------------------------
def _conv_bn0_stats_kernel(x_ref, a_ref, bias_ref, y_ref, s1_ref, s2_ref):
    """y = A @ x_col^T + b  (bf16 MXU, f32 acc) and per-batch BN0 sum/sumsq."""
    s_idx = pl.program_id(1)
    y = jnp.dot(a_ref[...], x_ref[0], preferred_element_type=jnp.float32)  # (Cr, TS)
    y = y + bias_ref[...]
    y_ref[0] = y

    @pl.when(s_idx == 0)
    def _():
        s1_ref[...] = jnp.zeros_like(s1_ref)
        s2_ref[...] = jnp.zeros_like(s2_ref)

    s1_ref[0] = s1_ref[0] + jnp.sum(y, axis=1, keepdims=True)
    s2_ref[0] = s2_ref[0] + jnp.sum(y * y, axis=1, keepdims=True)


def _gap_kernel(y_ref, sc0_ref, sh0_ref, gap_ref, *, radix, C):
    """z = relu(bn0(y)); accumulate per-batch sum over S of the radix split-sum."""
    s_idx = pl.program_id(1)
    z = jnp.maximum(y_ref[0] * sc0_ref[...] + sh0_ref[...], 0.0)        # (Cr, TS)
    gsum = z[0:C]                                                        # sublane slice
    for r in range(1, radix):
        gsum = gsum + z[r * C:(r + 1) * C]

    @pl.when(s_idx == 0)
    def _():
        gap_ref[...] = jnp.zeros_like(gap_ref)

    gap_ref[0] = gap_ref[0] + jnp.sum(gsum, axis=1, keepdims=True)


def _fc_attention_kernel(gap_ref, w1_ref, b1_ref, g1_ref, be1_ref,
                         w2_ref, b2_ref, att_ref, *, radix, C):
    """fc1 -> bn1 (training-mode batch stats) -> relu -> fc2 -> rSoftMax."""
    # TODO(synk): cardinality > 1 would need grouped fc1/fc2 + grouped rsoftmax layout.
    nb = float(gap_ref.shape[0])
    g1 = jnp.dot(gap_ref[...], w1_ref[...],
                 preferred_element_type=jnp.float32) + b1_ref[...]       # (B, inter)
    m1 = jnp.sum(g1, axis=0, keepdims=True) / nb
    v1 = jnp.maximum(jnp.sum(g1 * g1, axis=0, keepdims=True) / nb - m1 * m1, 0.0)
    sc1 = g1_ref[...] * lax.rsqrt(v1 + EPS)
    sh1 = be1_ref[...] - m1 * sc1
    h = jnp.maximum(g1 * sc1 + sh1, 0.0)
    logits = jnp.dot(h, w2_ref[...],
                     preferred_element_type=jnp.float32) + b2_ref[...]   # (B, Cr)
    # rSoftMax with cardinality == 1: softmax across the radix axis per channel.
    parts = [logits[:, r * C:(r + 1) * C] for r in range(radix)]
    m = parts[0]
    for r in range(1, radix):
        m = jnp.maximum(m, parts[r])
    es = [jnp.exp(p - m) for p in parts]
    den = es[0]
    for r in range(1, radix):
        den = den + es[r]
    inv = 1.0 / den
    att_ref[...] = jnp.concatenate([e * inv for e in es], axis=1)


def _attn_conv3_stats_kernel(y_ref, sc0_ref, sh0_ref, att_ref, w3_ref,
                             o_ref, t1_ref, t2_ref, *, radix, C):
    """Recompute z, apply split attention, 1x1x1 conv3, accumulate BN3 stats."""
    s_idx = pl.program_id(1)
    z = jnp.maximum(y_ref[0] * sc0_ref[...] + sh0_ref[...], 0.0)        # (Cr, TS)
    a = att_ref[0]                                                       # (Cr, 1)
    osum = a[0:C] * z[0:C]
    for r in range(1, radix):
        osum = osum + a[r * C:(r + 1) * C] * z[r * C:(r + 1) * C]        # (C, TS)
    # TODO(synk): conv3 operands could also be bf16 on v6e/v7x; FLOPs here are tiny.
    o = jnp.dot(w3_ref[...], osum, preferred_element_type=jnp.float32)   # (Cr, TS)
    o_ref[0] = o

    @pl.when(s_idx == 0)
    def _():
        t1_ref[...] = jnp.zeros_like(t1_ref)
        t2_ref[...] = jnp.zeros_like(t2_ref)

    t1_ref[0] = t1_ref[0] + jnp.sum(o, axis=1, keepdims=True)
    t2_ref[0] = t2_ref[0] + jnp.sum(o * o, axis=1, keepdims=True)


def _bn3_relu_kernel(o_ref, sc3_ref, sh3_ref, out_ref):
    out_ref[0] = jnp.maximum(o_ref[0] * sc3_ref[...] + sh3_ref[...], 0.0)


# --------------------------------------------------------------------------
# Wrapper
# --------------------------------------------------------------------------
def _pick_spatial_tile(S, max_tile):
    t = (min(S, max_tile) // 128) * 128
    while t >= 128:
        if S % t == 0:
            return t
        t -= 128
    return S  # tiny S: full-extent block is allowed


def splat_conv3d_forward(x, params, *, channels, radix, groups, ts_max=512):
    """x: [B, Cin, D, H, W] (NCDHW like PyTorch). Returns [B, channels*radix, D, H, W]."""
    assert groups == 1, "kernel implemented for cardinality == 1"
    assert radix > 1, "radix == 1 (sigmoid) path not instantiated"
    B, Cin, D, H, W = x.shape
    C = channels
    Cr = C * radix
    S = D * H * W
    G = groups * radix
    Cin_g, Cout_g = Cin // G, Cr // G
    K = 27 * Cin
    Kpad = ((K + 127) // 128) * 128
    TS = _pick_spatial_tile(S, ts_max)
    ST = S // TS
    inter = params["fc1_w"].shape[1]
    n = float(B * S)

    # ---- glue: transposed im2col [B, Kpad, S] (channel/K-major, S on lanes) ----
    xp = jnp.pad(x.astype(jnp.float32), ((0, 0), (0, 0), (1, 1), (1, 1), (1, 1)))
    cols = [xp[:, :, kd:kd + D, kh:kh + H, kw:kw + W]
            for kd in range(3) for kh in range(3) for kw in range(3)]
    xc = jnp.stack(cols, axis=2).reshape(B, Cin * 27, S)       # k = cin*27 + (kd*9+kh*3+kw)
    x_colT = jnp.pad(xc, ((0, 0), (0, Kpad - K), (0, 0))).astype(jnp.bfloat16)

    # ---- glue: grouped conv weight -> block-diagonal dense (Cr, Kpad), bf16 ----
    # TODO(synk): per-group matmuls would skip the zero blocks; negligible at G=2.
    w = params["conv_w"]                                        # (Cr, Cin_g, 3, 3, 3)
    A = jnp.zeros((Cr, Cin, 27), jnp.float32)
    for g in range(G):
        blk = w[g * Cout_g:(g + 1) * Cout_g].reshape(Cout_g, Cin_g, 27)
        A = A.at[g * Cout_g:(g + 1) * Cout_g, g * Cin_g:(g + 1) * Cin_g, :].set(blk)
    A = jnp.pad(A.reshape(Cr, Cin * 27), ((0, 0), (0, Kpad - K))).astype(jnp.bfloat16)

    bias_col = params["conv_b"].reshape(Cr, 1).astype(jnp.float32)

    # -------------------- K1: conv matmul + BN0 stats --------------------
    stat_shape = jax.ShapeDtypeStruct((B, Cr, 1), jnp.float32)
    yT, s1, s2 = pl.pallas_call(
        _conv_bn0_stats_kernel,
        out_shape=(jax.ShapeDtypeStruct((B, Cr, S), jnp.float32), stat_shape, stat_shape),
        grid=(B, ST),
        in_specs=[
            pl.BlockSpec((1, Kpad, TS), lambda b, s: (b, 0, s)),
            pl.BlockSpec((Cr, Kpad), lambda b, s: (0, 0)),
            pl.BlockSpec((Cr, 1), lambda b, s: (0, 0)),
        ],
        out_specs=(
            pl.BlockSpec((1, Cr, TS), lambda b, s: (b, 0, s)),
            pl.BlockSpec((1, Cr, 1), lambda b, s: (b, 0, 0)),
            pl.BlockSpec((1, Cr, 1), lambda b, s: (b, 0, 0)),
        ),
        compiler_params=pltpu.CompilerParams(
            dimension_semantics=("parallel", "arbitrary")),
        cost_estimate=pl.CostEstimate(
            flops=2 * B * S * Kpad * Cr, transcendentals=0,
            bytes_accessed=int(x_colT.size) * 2 + B * Cr * S * 4 + int(A.size) * 2),
    )(x_colT, A, bias_col)

    # ---- glue: BN0 scale/shift from the accumulated stats ----
    mean0 = jnp.sum(s1, axis=0) / n                             # (Cr, 1)
    var0 = jnp.maximum(jnp.sum(s2, axis=0) / n - mean0 * mean0, 0.0)
    scale0 = params["bn0_g"].reshape(Cr, 1) * lax.rsqrt(var0 + EPS)
    shift0 = params["bn0_b"].reshape(Cr, 1) - mean0 * scale0

    # -------------------- K2: bn0 + relu + global average pool --------------------
    gap_acc = pl.pallas_call(
        functools.partial(_gap_kernel, radix=radix, C=C),
        out_shape=jax.ShapeDtypeStruct((B, C, 1), jnp.float32),
        grid=(B, ST),
        in_specs=[
            pl.BlockSpec((1, Cr, TS), lambda b, s: (b, 0, s)),
            pl.BlockSpec((Cr, 1), lambda b, s: (0, 0)),
            pl.BlockSpec((Cr, 1), lambda b, s: (0, 0)),
        ],
        out_specs=pl.BlockSpec((1, C, 1), lambda b, s: (b, 0, 0)),
        compiler_params=pltpu.CompilerParams(
            dimension_semantics=("parallel", "arbitrary")),
    )(yT, scale0, shift0)
    gap = gap_acc[:, :, 0] / float(S)                           # (B, C)

    # -------------------- K3: fc1/bn1/relu/fc2/rSoftMax (tiny) --------------------
    def _full(shape):
        nd = len(shape)
        return pl.BlockSpec(shape, lambda i, _nd=nd: (0,) * _nd)

    fc_args = (gap,
               params["fc1_w"], params["fc1_b"].reshape(1, inter),
               params["bn1_g"].reshape(1, inter), params["bn1_b"].reshape(1, inter),
               params["fc2_w"], params["fc2_b"].reshape(1, Cr))
    att = pl.pallas_call(
        functools.partial(_fc_attention_kernel, radix=radix, C=C),
        out_shape=jax.ShapeDtypeStruct((B, Cr), jnp.float32),
        grid=(1,),
        in_specs=[_full(a.shape) for a in fc_args],
        out_specs=_full((B, Cr)),
        compiler_params=pltpu.CompilerParams(dimension_semantics=("arbitrary",)),
    )(*fc_args)
    att_bc = att[:, :, None]                                    # (B, Cr, 1)

    w3 = params["conv3_w"].T.astype(jnp.float32)                # (Cr, C)

    # -------------------- K4: attention-weighted sum + conv3 + BN3 stats --------------------
    oT, t1, t2 = pl.pallas_call(
        functools.partial(_attn_conv3_stats_kernel, radix=radix, C=C),
        out_shape=(jax.ShapeDtypeStruct((B, Cr, S), jnp.float32), stat_shape, stat_shape),
        grid=(B, ST),
        in_specs=[
            pl.BlockSpec((1, Cr, TS), lambda b, s: (b, 0, s)),
            pl.BlockSpec((Cr, 1), lambda b, s: (0, 0)),
            pl.BlockSpec((Cr, 1), lambda b, s: (0, 0)),
            pl.BlockSpec((1, Cr, 1), lambda b, s: (b, 0, 0)),
            pl.BlockSpec((Cr, C), lambda b, s: (0, 0)),
        ],
        out_specs=(
            pl.BlockSpec((1, Cr, TS), lambda b, s: (b, 0, s)),
            pl.BlockSpec((1, Cr, 1), lambda b, s: (b, 0, 0)),
            pl.BlockSpec((1, Cr, 1), lambda b, s: (b, 0, 0)),
        ),
        compiler_params=pltpu.CompilerParams(
            dimension_semantics=("parallel", "arbitrary")),
        cost_estimate=pl.CostEstimate(
            flops=2 * B * S * C * Cr + 8 * B * S * Cr, transcendentals=0,
            bytes_accessed=2 * B * Cr * S * 4),
    )(yT, scale0, shift0, att_bc, w3)

    # ---- glue: BN3 scale/shift ----
    mean3 = jnp.sum(t1, axis=0) / n
    var3 = jnp.maximum(jnp.sum(t2, axis=0) / n - mean3 * mean3, 0.0)
    scale3 = params["bn3_g"].reshape(Cr, 1) * lax.rsqrt(var3 + EPS)
    shift3 = params["bn3_b"].reshape(Cr, 1) - mean3 * scale3

    # -------------------- K5: bn3 + relu --------------------
    outT = pl.pallas_call(
        _bn3_relu_kernel,
        out_shape=jax.ShapeDtypeStruct((B, Cr, S), jnp.float32),
        grid=(B, ST),
        in_specs=[
            pl.BlockSpec((1, Cr, TS), lambda b, s: (b, 0, s)),
            pl.BlockSpec((Cr, 1), lambda b, s: (0, 0)),
            pl.BlockSpec((Cr, 1), lambda b, s: (0, 0)),
        ],
        out_specs=pl.BlockSpec((1, Cr, TS), lambda b, s: (b, 0, s)),
        compiler_params=pltpu.CompilerParams(
            dimension_semantics=("parallel", "parallel")),
    )(oT, scale3, shift3)

    # channel-major [B, Cr, S] is already NCDHW order -> plain reshape, no transpose
    return outT.reshape(B, Cr, D, H, W)


# --------------------------------------------------------------------------
# pure-JAX reference (self-check).  The conv uses bf16 operands with f32
# accumulation, mirroring the kernel's MXU precision, so the comparison stays tight.
# --------------------------------------------------------------------------
def _bn5d_train(y, gamma, beta):
    mean = jnp.mean(y, axis=(0, 2, 3, 4), keepdims=True)
    var = jnp.mean(y * y, axis=(0, 2, 3, 4), keepdims=True) - mean * mean
    scale = gamma.reshape(1, -1, 1, 1, 1) * lax.rsqrt(var + EPS)
    shift = beta.reshape(1, -1, 1, 1, 1) - mean * scale
    return y * scale + shift


def ref_forward(x, params, *, channels, radix, groups):
    B, Cin, D, H, W = x.shape
    Cr = channels * radix
    G = groups * radix
    y = lax.conv_general_dilated(
        x.astype(jnp.bfloat16), params["conv_w"].astype(jnp.bfloat16),
        window_strides=(1, 1, 1), padding=((1, 1), (1, 1), (1, 1)),
        dimension_numbers=("NCDHW", "OIDHW", "NCDHW"),
        feature_group_count=G, preferred_element_type=jnp.float32)
    y = y + params["conv_b"].reshape(1, Cr, 1, 1, 1)
    y = jnp.maximum(_bn5d_train(y, params["bn0_g"], params["bn0_b"]), 0.0)
    splited = [y[:, r * channels:(r + 1) * channels] for r in range(radix)]
    gap = sum(splited)
    gap = jnp.mean(gap, axis=(2, 3, 4))                      # (B, C)
    g1 = gap @ params["fc1_w"] + params["fc1_b"]
    m1 = jnp.mean(g1, axis=0, keepdims=True)
    v1 = jnp.mean(g1 * g1, axis=0, keepdims=True) - m1 * m1
    g1 = g1 * (params["bn1_g"] * lax.rsqrt(v1 + EPS)) + (
        params["bn1_b"] - m1 * params["bn1_g"] * lax.rsqrt(v1 + EPS))
    g1 = jnp.maximum(g1, 0.0)
    att = g1 @ params["fc2_w"] + params["fc2_b"]             # (B, Cr)
    att = jax.nn.softmax(att.reshape(B, radix, channels), axis=1)
    out = sum(att[:, r][:, :, None, None, None] * splited[r] for r in range(radix))
    o = jnp.einsum("bcdhw,co->bodhw", out, params["conv3_w"])
    o = _bn5d_train(o, params["bn3_g"], params["bn3_b"])
    return jnp.maximum(o, 0.0)


if __name__ == "__main__":
    B, Cin, D, H, W = 2, 4, 8, 8, 8
    channels, radix, groups, reduction_factor = 8, 2, 1, 4
    Cr = channels * radix
    G = groups * radix
    inter = max(Cin * radix // reduction_factor, 32)

    key = jax.random.PRNGKey(0)
    ks = jax.random.split(key, 8)
    params = {
        "conv_w": 0.1 * jax.random.normal(ks[0], (Cr, Cin // G, 3, 3, 3), jnp.float32),
        "conv_b": 0.1 * jax.random.normal(ks[1], (Cr,), jnp.float32),
        "bn0_g": jnp.ones((Cr,), jnp.float32), "bn0_b": jnp.zeros((Cr,), jnp.float32),
        "fc1_w": 0.1 * jax.random.normal(ks[2], (channels, inter), jnp.float32),
        "fc1_b": 0.1 * jax.random.normal(ks[3], (inter,), jnp.float32),
        "bn1_g": jnp.ones((inter,), jnp.float32), "bn1_b": jnp.zeros((inter,), jnp.float32),
        "fc2_w": 0.1 * jax.random.normal(ks[4], (inter, Cr), jnp.float32),
        "fc2_b": 0.1 * jax.random.normal(ks[5], (Cr,), jnp.float32),
        "conv3_w": 0.1 * jax.random.normal(ks[6], (channels, Cr), jnp.float32),
        "bn3_g": jnp.ones((Cr,), jnp.float32), "bn3_b": jnp.zeros((Cr,), jnp.float32),
    }
    x = jax.random.normal(ks[7], (B, Cin, D, H, W), jnp.float32)

    # ts_max=256 -> 2 spatial tiles per batch, exercising the cross-tile
    # accumulator (stats/GAP) path; use larger tiles for production shapes.
    out = splat_conv3d_forward(x, params, channels=channels, radix=radix,
                               groups=groups, ts_max=256)
    out = jax.block_until_ready(out)

    ref = jax.block_until_ready(
        ref_forward(x, params, channels=channels, radix=radix, groups=groups))
    np.testing.assert_allclose(np.asarray(out), np.asarray(ref), rtol=2e-3, atol=2e-3)

    print("KERNEL_OK")
</pallas_src>

<mosaic_0001>
module attributes {stable_mosaic.version = 11 : i64} {
  func.func @_conv_bn0_stats_kernel(%arg0: i32, %arg1: i32, %arg2: memref<1x128x256xbf16, #tpu.memory_space<vmem>>, %arg3: memref<16x128xbf16, #tpu.memory_space<vmem>>, %arg4: memref<16x1xf32, #tpu.memory_space<vmem>>, %arg5: memref<1x16x256xf32, #tpu.memory_space<vmem>>, %arg6: memref<1x16x1xf32, #tpu.memory_space<vmem>>, %arg7: memref<1x16x1xf32, #tpu.memory_space<vmem>>) attributes {dimension_semantics = [#tpu.dimension_semantics<parallel>, #tpu.dimension_semantics<arbitrary>], iteration_bounds = array<i64: 2, 2>, scalar_prefetch = 0 : i64, scratch_operands = 0 : i64, tpu.core_type = #tpu.core_type<tc>, window_params = [{transform_indices = @transform_0, window_bounds = array<i64: 1, 128, 256>}, {pipeline_mode = #tpu.pipeline_mode<synchronous>, transform_indices = @transform_1, window_bounds = array<i64: 16, 128>}, {pipeline_mode = #tpu.pipeline_mode<synchronous>, transform_indices = @transform_2, window_bounds = array<i64: 16, 1>}, {transform_indices = @transform_3, window_bounds = array<i64: 1, 16, 256>}, {transform_indices = @transform_4, window_bounds = array<i64: 1, 16, 1>}, {transform_indices = @transform_5, window_bounds = array<i64: 1, 16, 1>}]} {
    %c0 = arith.constant 0 : index
    %c0_0 = arith.constant 0 : index
    %0 = vector.load %arg3[%c0, %c0_0] : memref<16x128xbf16, #tpu.memory_space<vmem>>, vector<16x128xbf16>
    %c0_1 = arith.constant 0 : index
    %c0_2 = arith.constant 0 : index
    %c0_3 = arith.constant 0 : index
    %1 = vector.load %arg2[%c0_1, %c0_2, %c0_3] : memref<1x128x256xbf16, #tpu.memory_space<vmem>>, vector<1x128x256xbf16>
    %2 = vector.shape_cast %1 : vector<1x128x256xbf16> to vector<128x256xbf16>
    %cst = arith.constant dense<0.000000e+00> : vector<16x256xf32>
    %3 = tpu.matmul %0, %2, %cst {dimension_numbers = #tpu.dot_dimension_numbers<[1], [0], [0], [1], [0, 0, 1, 1], [], []>} : vector<16x128xbf16>, vector<128x256xbf16>, vector<16x256xf32> -> vector<16x256xf32>
    %c0_4 = arith.constant 0 : index
    %c0_5 = arith.constant 0 : index
    %4 = vector.load %arg4[%c0_4, %c0_5] : memref<16x1xf32, #tpu.memory_space<vmem>>, vector<16x1xf32>
    %5 = vector.broadcast %4 : vector<16x1xf32> to vector<16x256xf32>
    %6 = arith.addf %3, %5 : vector<16x256xf32>
    %c0_6 = arith.constant 0 : index
    %c0_7 = arith.constant 0 : index
    %c0_8 = arith.constant 0 : index
    %7 = vector.load %arg5[%c0_6, %c0_7, %c0_8] : memref<1x16x256xf32, #tpu.memory_space<vmem>>, vector<1x16x256xf32>
    %8 = vector.shape_cast %7 : vector<1x16x256xf32> to vector<16x256xf32>
    %9 = vector.shape_cast %6 : vector<16x256xf32> to vector<1x16x256xf32>
    tpu.vector_store %arg5[%c0_6, %c0_7, %c0_8], %9 {strides = array<i32>} : memref<1x16x256xf32, #tpu.memory_space<vmem>>, vector<1x16x256xf32>,
    %c0_i32 = arith.constant 0 : i32
    %10 = arith.cmpi eq, %arg1, %c0_i32 : i32
    %11 = arith.extui %10 : i1 to i32
    %c0_i32_9 = arith.constant 0 : i32
    %12 = arith.cmpi ne, %11, %c0_i32_9 : i32
    scf.if %12 {
      %cst_24 = arith.constant 0.000000e+00 : f32
      %30 = vector.broadcast %cst_24 : f32 to vector<1x16x1xf32>
      %c0_25 = arith.constant 0 : index
      %c0_26 = arith.constant 0 : index
      %c0_27 = arith.constant 0 : index
      %31 = vector.load %arg6[%c0_25, %c0_26, %c0_27] : memref<1x16x1xf32, #tpu.memory_space<vmem>>, vector<1x16x1xf32>
      tpu.vector_store %arg6[%c0_25, %c0_26, %c0_27], %30 {strides = array<i32>} : memref<1x16x1xf32, #tpu.memory_space<vmem>>, vector<1x16x1xf32>,
      %cst_28 = arith.constant 0.000000e+00 : f32
      %32 = vector.broadcast %cst_28 : f32 to vector<1x16x1xf32>
      %c0_29 = arith.constant 0 : index
      %c0_30 = arith.constant 0 : index
      %c0_31 = arith.constant 0 : index
      %33 = vector.load %arg7[%c0_29, %c0_30, %c0_31] : memref<1x16x1xf32, #tpu.memory_space<vmem>>, vector<1x16x1xf32>
      tpu.vector_store %arg7[%c0_29, %c0_30, %c0_31], %32 {strides = array<i32>} : memref<1x16x1xf32, #tpu.memory_space<vmem>>, vector<1x16x1xf32>,
    } else {
    }
    %c0_10 = arith.constant 0 : index
    %c0_11 = arith.constant 0 : index
    %c0_12 = arith.constant 0 : index
    %13 = vector.load %arg6[%c0_10, %c0_11, %c0_12] : memref<1x16x1xf32, #tpu.memory_space<vmem>>, vector<1x16x1xf32>
    %14 = vector.shape_cast %13 : vector<1x16x1xf32> to vector<16x1xf32>
    %cst_13 = arith.constant dense<0.000000e+00> : vector<16xf32>
    %15 = vector.multi_reduction <add>, %6, %cst_13 [1] : vector<16x256xf32> to vector<16xf32>
    %16 = vector.shape_cast %15 : vector<16xf32> to vector<16x1xf32>
    %17 = arith.addf %14, %16 : vector<16x1xf32>
    %c0_14 = arith.constant 0 : index
    %c0_15 = arith.constant 0 : index
    %c0_16 = arith.constant 0 : index
    %18 = vector.load %arg6[%c0_14, %c0_15, %c0_16] : memref<1x16x1xf32, #tpu.memory_space<vmem>>, vector<1x16x1xf32>
    %19 = vector.shape_cast %18 : vector<1x16x1xf32> to vector<16x1xf32>
    %20 = vector.shape_cast %17 : vector<16x1xf32> to vector<1x16x1xf32>
    tpu.vector_store %arg6[%c0_14, %c0_15, %c0_16], %20 {strides = array<i32>} : memref<1x16x1xf32, #tpu.memory_space<vmem>>, vector<1x16x1xf32>,
    %c0_17 = arith.constant 0 : index
    %c0_18 = arith.constant 0 : index
    %c0_19 = arith.constant 0 : index
    %21 = vector.load %arg7[%c0_17, %c0_18, %c0_19] : memref<1x16x1xf32, #tpu.memory_space<vmem>>, vector<1x16x1xf32>
    %22 = vector.shape_cast %21 : vector<1x16x1xf32> to vector<16x1xf32>
    %23 = arith.mulf %6, %6 : vector<16x256xf32>
    %cst_20 = arith.constant dense<0.000000e+00> : vector<16xf32>
    %24 = vector.multi_reduction <add>, %23, %cst_20 [1] : vector<16x256xf32> to vector<16xf32>
    %25 = vector.shape_cast %24 : vector<16xf32> to vector<16x1xf32>
    %26 = arith.addf %22, %25 : vector<16x1xf32>
    %c0_21 = arith.constant 0 : index
    %c0_22 = arith.constant 0 : index
    %c0_23 = arith.constant 0 : index
    %27 = vector.load %arg7[%c0_21, %c0_22, %c0_23] : memref<1x16x1xf32, #tpu.memory_space<vmem>>, vector<1x16x1xf32>
    %28 = vector.shape_cast %27 : vector<1x16x1xf32> to vector<16x1xf32>
    %29 = vector.shape_cast %26 : vector<16x1xf32> to vector<1x16x1xf32>
    tpu.vector_store %arg7[%c0_21, %c0_22, %c0_23], %29 {strides = array<i32>} : memref<1x16x1xf32, #tpu.memory_space<vmem>>, vector<1x16x1xf32>,
    return
  }
  func.func @transform_0(%arg0: i32, %arg1: i32) -> (i32, i32, i32) {
    %c0_i32 = arith.constant 0 : i32
    %c0_i32_0 = arith.constant 0 : i32
    return %arg0, %c0_i32, %arg1 : i32, i32, i32
  }
  func.func @transform_1(%arg0: i32, %arg1: i32) -> (i32, i32) {
    %c0_i32 = arith.constant 0 : i32
    %c0_i32_0 = arith.constant 0 : i32
    %c0_i32_1 = arith.constant 0 : i32
    return %c0_i32, %c0_i32_0 : i32, i32
  }
  func.func @transform_2(%arg0: i32, %arg1: i32) -> (i32, i32) {
    %c0_i32 = arith.constant 0 : i32
    %c0_i32_0 = arith.constant 0 : i32
    %c0_i32_1 = arith.constant 0 : i32
    return %c0_i32, %c0_i32_0 : i32, i32
  }
  func.func @transform_3(%arg0: i32, %arg1: i32) -> (i32, i32, i32) {
    %c0_i32 = arith.constant 0 : i32
    %c0_i32_0 = arith.constant 0 : i32
    return %arg0, %c0_i32, %arg1 : i32, i32, i32
  }
  func.func @transform_4(%arg0: i32, %arg1: i32) -> (i32, i32, i32) {
    %c0_i32 = arith.constant 0 : i32
    %c0_i32_0 = arith.constant 0 : i32
    %c0_i32_1 = arith.constant 0 : i32
    return %arg0, %c0_i32, %c0_i32_0 : i32, i32, i32
  }
  func.func @transform_5(%arg0: i32, %arg1: i32) -> (i32, i32, i32) {
    %c0_i32 = arith.constant 0 : i32
    %c0_i32_0 = arith.constant 0 : i32
    %c0_i32_1 = arith.constant 0 : i32
    return %arg0, %c0_i32, %c0_i32_0 : i32, i32, i32
  }
}

</mosaic_0001>

<llo_original>
// kernel: tpu_custom_call.1
$region0: #{tpu_custom_call.1}
  #allocation0 [shape = 'u32[]', space=smem, size = 0x4, offset = 0x4, fixed_abs, tag = 'smem constant byte address 0x4 - core index']
  #allocation1 [shape = 'u32[144,128]{1,0:T(1,128)}', space=vmem, size = 0x12000, scoped, tag = 'internal scratch']
  %s0 = inlined_call_operand.hbm [shape: bf16[2,128,512], index: 0, kind: input, shape index: {}]
  %s1 = inlined_call_operand.vmem [shape: bf16[16,128], index: 1, kind: input, shape index: {}]
  %s2 = inlined_call_operand.vmem [shape: f32[16,1], index: 2, kind: input, shape index: {}]
  %s3 = inlined_call_operand.hbm [shape: f32[2,16,512], index: 3, kind: output, shape index: {0}]
  %s4 = inlined_call_operand.vmem [shape: f32[2,16,1], index: 4, kind: output, shape index: {1}]
  %s5 = inlined_call_operand.vmem [shape: f32[2,16,1], index: 5, kind: output, shape index: {2}]
  %6 = xla_tuple %s3, %s4, %s5
  %s7 = sld [smem:[#allocation0]]
  $region69: #{tpu_custom_call.1} parent=0
    _
  %s9 = ssub.s32 1, %s7
  %s10 = scalar_select 0, %s9, %s7
  $region1: #{tpu_custom_call.1} parent=0
    #allocation2 [shape = 'u8[131072]{0}', space=vmem, size = 0x20000, scoped, tag = 'input window, operand 0']
    #allocation3 [shape = 's32[2]{0}', space=sflag, size = 0x8, scoped, tag = 'scoped memory for tpu_custom_call.1']
    #allocation4 [shape = 's32[2]{0}', space=sflag, size = 0x8, scoped, tag = 'scoped memory for tpu_custom_call.1']
    #allocation5 [shape = 'u8[32768]{0}', space=vmem, size = 0x8000, scoped, tag = 'output window, operand 0']
    %11 = vsyncpa [#allocation3], 0
    %s12 = scalar_lea.sflag [#allocation3], 1
    %13 = vsyncpa %s12, 0
    %14 = vsyncpa [#allocation4], 0
    %s15 = scalar_lea.sflag [#allocation4], 1
    %16 = vsyncpa %s15, 0
    loop: start=0, step=1, limit=6
    $region2: #{tpu_custom_call.1} parent=1 // loop_pre_header
      _
    $region3: #{tpu_custom_call.1} parent=1 // loop_header
      %s18 = sphi 0, %s22
      %p19 = scmp.ge.s32.totalorder %s18, 6
      %s25 = sphi 0, %s37
      %s26 = sphi 0, %s33
      %s27 = sphi 0, %s25
      %s28 = sphi 0, %s26
      %s29 = sphi 0, %s27
      %s30 = sphi 0, %s28
      %s42 = sphi 0, %s44
      %s45 = sphi 0, %s42
      %s46 = sphi 0, %s45
      %s62 = sphi 0, %s46
      %s66 = sphi 0, %s66
      %s68 = sphi 0, %s66
      %s69 = sphi 0, %s68
      %s83 = sphi 0, %s69
      %s87 = sphi 0, %s87
      %s89 = sphi 0, %s87
      %s90 = sphi 0, %s89
      %s104 = sphi 0, %s90
      %s112 = sphi 0, %s114
      %s115 = sphi 0, %s112
      %s116 = sphi 0, %s115
      %s132 = sphi 0, %s116
      %s138 = sphi 0, %s140
      %s141 = sphi 0, %s138
      %s142 = sphi 0, %s141
      %s158 = sphi 0, %s142
      %s164 = sphi 0, %s166
      %s167 = sphi 0, %s164
      %s168 = sphi 0, %s167
      %s184 = sphi 0, %s168
    $region4: #{tpu_custom_call.1} parent=1 // loop_header_branch
      %21 = sbr.rel (%p19) target = $region8
    $region5: #{tpu_custom_call.1} parent=1 // loop_body
      %s23 = ssub.s32 %s18, 1
      %s24 = ssub.s32 %s18, 2
      %s31 = sadd.s32 1, %s26
      %p32 = scmp.ge.s32.totalorder %s31, 2
      %s33 = scalar_select %p32, 0, %s31
      %s34 = sadd.s32 1, %s25
      %s35 = scalar_select %p32, %s34, %s25
      %p36 = scmp.ge.s32.totalorder %s35, 2
      %s37 = scalar_select %p36, 0, %s35
      %s38 = ssub.s32 %s25, %s37
      %s39 = ssub.s32 %s26, %s33
      %s40 = sor.u32 %s38, %s39
      %p41 = scmp.eq.s32.totalorder %s40, 0
      %s43 = sadd.s32 %s42, 1
      %s44 = scalar_select %p41, %s42, %s43
      %p47 = pneg %p41
      %p48 = scmp.eq.s32.totalorder %s18, 3
      %p49 = por %p47, %p48
      %p50 = scmp.ne.s32.totalorder %s42, %s45
      %p51 = scmp.eq.s32.totalorder %s18, 0
      %p52 = por %p50, %p51
      %p53 = scmp.ne.s32.totalorder %s42, %s45
      %p54 = scmp.eq.s32.totalorder %s23, 3
      %p55 = por %p53, %p54
      %p56 = scmp.ne.s32.totalorder %s45, %s46
      %p57 = scmp.eq.s32.totalorder %s23, 0
      %p58 = por %p56, %p57
      %p59 = scmp.ne.s32.totalorder %s45, %s46
      %p60 = scmp.eq.s32.totalorder %s24, 3
      %p61 = por %p59, %p60
      %p63 = scmp.ne.s32.totalorder %s46, %s62
      %p64 = scmp.eq.s32.totalorder %s24, 0
      %p65 = por %p63, %p64
      %s67 = sadd.s32 %s66, 1
      %p70 = scmp.eq.s32.totalorder %s18, 3
      %p71 = scmp.ne.s32.totalorder %s66, %s68
      %p72 = scmp.eq.s32.totalorder %s18, 0
      %p73 = por %p71, %p72
      %p74 = scmp.ne.s32.totalorder %s66, %s68
      %p75 = scmp.eq.s32.totalorder %s23, 3
      %p76 = por %p74, %p75
      %p77 = scmp.ne.s32.totalorder %s68, %s69
      %p78 = scmp.eq.s32.totalorder %s23, 0
      %p79 = por %p77, %p78
      %p80 = scmp.ne.s32.totalorder %s68, %s69
      %p81 = scmp.eq.s32.totalorder %s24, 3
      %p82 = por %p80, %p81
      %p84 = scmp.ne.s32.totalorder %s69, %s83
      %p85 = scmp.eq.s32.totalorder %s24, 0
      %p86 = por %p84, %p85
      %s88 = sadd.s32 %s87, 1
      %p91 = scmp.eq.s32.totalorder %s18, 3
      %p92 = scmp.ne.s32.totalorder %s87, %s89
      %p93 = scmp.eq.s32.totalorder %s18, 0
      %p94 = por %p92, %p93
      %p95 = scmp.ne.s32.totalorder %s87, %s89
      %p96 = scmp.eq.s32.totalorder %s23, 3
      %p97 = por %p95, %p96
      %p98 = scmp.ne.s32.totalorder %s89, %s90
      %p99 = scmp.eq.s32.totalorder %s23, 0
      %p100 = por %p98, %p99
      %p101 = scmp.ne.s32.totalorder %s89, %s90
      %p102 = scmp.eq.s32.totalorder %s24, 3
      %p103 = por %p101, %p102
      %p105 = scmp.ne.s32.totalorder %s90, %s104
      %p106 = scmp.eq.s32.totalorder %s24, 0
      %p107 = por %p105, %p106
      %s108 = ssub.s32 %s25, %s37
      %s109 = ssub.s32 %s26, %s33
      %s110 = sor.u32 %s108, %s109
      %p111 = scmp.eq.s32.totalorder %s110, 0
      %s113 = sadd.s32 %s112, 1
      %s114 = scalar_select %p111, %s112, %s113
      %p117 = pneg %p111
      %p118 = scmp.eq.s32.totalorder %s18, 3
      %p119 = por %p117, %p118
      %p120 = scmp.ne.s32.totalorder %s112, %s115
      %p121 = scmp.eq.s32.totalorder %s18, 0
      %p122 = por %p120, %p121
      %p123 = scmp.ne.s32.totalorder %s112, %s115
      %p124 = scmp.eq.s32.totalorder %s23, 3
      %p125 = por %p123, %p124
      %p126 = scmp.ne.s32.totalorder %s115, %s116
      %p127 = scmp.eq.s32.totalorder %s23, 0
      %p128 = por %p126, %p127
      %p129 = scmp.ne.s32.totalorder %s115, %s116
      %p130 = scmp.eq.s32.totalorder %s24, 3
      %p131 = por %p129, %p130
      %p133 = scmp.ne.s32.totalorder %s116, %s132
      %p134 = scmp.eq.s32.totalorder %s24, 0
      %p135 = por %p133, %p134
      %s136 = ssub.s32 %s25, %s37
      %p137 = scmp.eq.s32.totalorder %s136, 0
      %s139 = sadd.s32 %s138, 1
      %s140 = scalar_select %p137, %s138, %s139
      %p143 = pneg %p137
      %p144 = scmp.eq.s32.totalorder %s18, 3
      %p145 = por %p143, %p144
      %p146 = scmp.ne.s32.totalorder %s138, %s141
      %p147 = scmp.eq.s32.totalorder %s18, 0
      %p148 = por %p146, %p147
      %p149 = scmp.ne.s32.totalorder %s138, %s141
      %p150 = scmp.eq.s32.totalorder %s23, 3
      %p151 = por %p149, %p150
      %p152 = scmp.ne.s32.totalorder %s141, %s142
      %p153 = scmp.eq.s32.totalorder %s23, 0
      %p154 = por %p152, %p153
      %p155 = scmp.ne.s32.totalorder %s141, %s142
      %p156 = scmp.eq.s32.totalorder %s24, 3
      %p157 = por %p155, %p156
      %p159 = scmp.ne.s32.totalorder %s142, %s158
      %p160 = scmp.eq.s32.totalorder %s24, 0
      %p161 = por %p159, %p160
      %s162 = ssub.s32 %s25, %s37
      %p163 = scmp.eq.s32.totalorder %s162, 0
      %s165 = sadd.s32 %s164, 1
      %s166 = scalar_select %p163, %s164, %s165
      %p169 = pneg %p163
      %p170 = scmp.eq.s32.totalorder %s18, 3
      %p171 = por %p169, %p170
      %p172 = scmp.ne.s32.totalorder %s164, %s167
      %p173 = scmp.eq.s32.totalorder %s18, 0
      %p174 = por %p172, %p173
      %p175 = scmp.ne.s32.totalorder %s164, %s167
      %p176 = scmp.eq.s32.totalorder %s23, 3
      %p177 = por %p175, %p176
      %p178 = scmp.ne.s32.totalorder %s167, %s168
      %p179 = scmp.eq.s32.totalorder %s23, 0
      %p180 = por %p178, %p179
      %p181 = scmp.ne.s32.totalorder %s167, %s168
      %p182 = scmp.eq.s32.totalorder %s24, 3
      %p183 = por %p181, %p182
      %p185 = scmp.ne.s32.totalorder %s168, %s184
      %p186 = scmp.eq.s32.totalorder %s24, 0
      %p187 = por %p185, %p186
      %p188 = scmp.le.s32.totalorder 1, %s18
      %p189 = scmp.lt.s32.totalorder %s18, 5
      %p190 = pnand %p188, %p189
      %p191 = pneg %p190
      // Predicated region
      $region9: #{tpu_custom_call.1} parent=5 // pred_check
        _
      $region10: #{tpu_custom_call.1} parent=5 // pred_check_branch
        %193 = sbr.rel (%p190) target = $region12
      $region11: #{tpu_custom_call.1} parent=5 // pred_region
        %s194 = ssub.s32 %s18, 1
        // Predicated region
        $region13: #{tpu_custom_call.1} parent=11 // pred_check
          %p195 = pneg %p79
        $region14: #{tpu_custom_call.1} parent=11 // pred_check_branch
          %197 = sbr.rel (%p195) target = $region16
        $region15: #{tpu_custom_call.1} parent=11 // pred_region
          _
        $region16: #{tpu_custom_call.1} parent=11 // pred_fallthru
          _
        // Predicated region
        $region17: #{tpu_custom_call.1} parent=11 // pred_check
          %p198 = pneg %p100
        $region18: #{tpu_custom_call.1} parent=11 // pred_check_branch
          %200 = sbr.rel (%p198) target = $region20
        $region19: #{tpu_custom_call.1} parent=11 // pred_region
          _
        $region20: #{tpu_custom_call.1} parent=11 // pred_fallthru
          _
      $region12: #{tpu_custom_call.1} parent=5 // pred_fallthru
        _
      %p201 = scmp.lt.s32.totalorder %s18, 4
      // Predicated region
      $region21: #{tpu_custom_call.1} parent=5 // pred_check
        %p202 = pneg %p201
      $region22: #{tpu_custom_call.1} parent=5 // pred_check_branch
        %204 = sbr.rel (%p202) target = $region24
      $region23: #{tpu_custom_call.1} parent=5 // pred_region
        // Predicated region
        $region25: #{tpu_custom_call.1} parent=23 // pred_check
          %p205 = pneg %p52
        $region26: #{tpu_custom_call.1} parent=23 // pred_check_branch
          %207 = sbr.rel (%p205) target = $region28
        $region27: #{tpu_custom_call.1} parent=23 // pred_region
          %s208 = sand.u32 %s42, 1
          %s209 = scalar_lea.sflag [#allocation3], %s208
          %s210 = sand.u32 %s42, 1
          %s211 = smul.addr %s210, 128
          %s212 = scalar_lea.vmem [#allocation2], %s211
          %s213 = smul.u32 2, %s26
          %s215 = ssub.s32 2048, 2048
          %216 = vsyncadd %s209, %s215
          %s217 = smul.addr %s25, 64
          %s218 = sadd.s32 %s213, %s217
          %s219 = smul.addr %s218, 64
          %s220 = scalar_lea.hbm %s0, %s219
          %s221 = sshll.u32 %s212, 4
          %s222 = int_to_ptr.vmem [resolvable:$true] %s221
          %227 = dma.hbm_to_vmem [thread:$0]  %s220, 2048, %s222, %s209, 256, 128, 8
        $region28: #{tpu_custom_call.1} parent=23 // pred_fallthru
          _
      $region24: #{tpu_custom_call.1} parent=5 // pred_fallthru
        _
      %p228 = scmp.le.s32.totalorder 1, %s18
      %p229 = scmp.lt.s32.totalorder %s18, 5
      %p230 = pnand %p228, %p229
      %p231 = pneg %p230
      // Predicated region
      $region29: #{tpu_custom_call.1} parent=5 // pred_check
        _
      $region30: #{tpu_custom_call.1} parent=5 // pred_check_branch
        %233 = sbr.rel (%p230) target = $region32
      $region31: #{tpu_custom_call.1} parent=5 // pred_region
        %s234 = ssub.s32 %s18, 1
        %s235 = sand.u32 %s45, 1
        %s236 = scalar_lea.sflag [#allocation3], %s235
        %s237 = sand.u32 %s45, 1
        %s238 = smul.addr %s237, 128
        %s239 = scalar_lea.vmem [#allocation2], %s238
        // Predicated region
        $region33: #{tpu_custom_call.1} parent=31 // pred_check
          %p240 = pneg %p58
        $region34: #{tpu_custom_call.1} parent=31 // pred_check_branch
          %242 = sbr.rel (%p240) target = $region36
        $region35: #{tpu_custom_call.1} parent=31 // pred_region
          %243 = dma.done %s236, 2048
        $region36: #{tpu_custom_call.1} parent=31 // pred_fallthru
          _
        %s244 = sand.u32 %s45, 1
        %s245 = scalar_lea.sflag [#allocation3], %s244
        %s246 = sand.u32 %s45, 1
        %s247 = smul.addr %s246, 128
        %s248 = scalar_lea.vmem [#allocation2], %s247
        %p249 = pneg %p58
        %p250 = pneg %p55
        %p251 = pneg %p79
        %p252 = pneg %p76
        %p253 = pneg %p100
        %p254 = pneg %p97
        %p255 = pneg %p128
        %p256 = pneg %p125
        %s257 = sand.u32 %s115, 1
        %s258 = scalar_lea.sflag [#allocation4], %s257
        %s259 = sand.u32 %s115, 1
        %s260 = smul.addr %s259, 32
        %s261 = scalar_lea.vmem [#allocation5], %s260
        %p262 = pneg %p154
        %p263 = pneg %p151
        %p264 = scmp.lt.s32.totalorder %s27, 1
        %s265 = scalar_select %p264, %s27, 1
        %s266 = smul.addr %s265, 2
        %s267 = smul.addr %s266, 8
        %s268 = scalar_lea.vmem %s4, %s267
        %p269 = pneg %p180
        %p270 = pneg %p177
        %p271 = scmp.lt.s32.totalorder %s27, 1
        %s272 = scalar_select %p271, %s27, 1
        %s273 = smul.addr %s272, 2
        %s274 = smul.addr %s273, 8
        %s275 = scalar_lea.vmem %s5, %s274
        %s276 = smul.u32 2, %s28
        %s277 = smul.u32 2, %s28
        %p278 = scmp.lt.s32.totalorder %s27, 1
        %s279 = scalar_select %p278, %s27, 1
        %s280 = smul.addr %s279, 2
        %s281 = smul.addr %s280, 8
        %s282 = scalar_lea.vmem %s4, %s281
        %p283 = scmp.lt.s32.totalorder %s27, 1
        %s284 = scalar_select %p283, %s27, 1
        %s285 = smul.addr %s284, 2
        %s286 = smul.addr %s285, 8
        %s287 = scalar_lea.vmem %s5, %s286
        %v289 = vld [vmem:[%s1] sm:$0xf]
        %v290 = vld [vmem:[%s1 + $0x4] sm:$0xf]
        %v291 = vld [vmem:[%s239] sm:$0xff]
        %v292 = vld [vmem:[%s239 + $0x8] sm:$0xff]
        %v293 = vld [vmem:[%s239 + $0x10] sm:$0xff]
        %v294 = vld [vmem:[%s239 + $0x18] sm:$0xff]
        %v295 = vld [vmem:[%s239 + $0x20] sm:$0xff]
        %v296 = vld [vmem:[%s239 + $0x28] sm:$0xff]
        %v297 = vld [vmem:[%s239 + $0x30] sm:$0xff]
        %v298 = vld [vmem:[%s239 + $0x38] sm:$0xff]
        %v299 = vld [vmem:[%s239 + $0x40] sm:$0xff]
        %v300 = vld [vmem:[%s239 + $0x48] sm:$0xff]
        %v301 = vld [vmem:[%s239 + $0x50] sm:$0xff]
        %v302 = vld [vmem:[%s239 + $0x58] sm:$0xff]
        %v303 = vld [vmem:[%s239 + $0x60] sm:$0xff]
        %v304 = vld [vmem:[%s239 + $0x68] sm:$0xff]
        %v305 = vld [vmem:[%s239 + $0x70] sm:$0xff]
        %v306 = vld [vmem:[%s239 + $0x78] sm:$0xff]
        %v307 = vld [vmem:[%s2] sm:$0xff]
        %v308 = vld [vmem:[%s2 + $0x8] sm:$0xff]
        %310 = vset.pattern.permute.xlu0 0
        %311 = vperm.xlu0 %310, %v307
        %v312 = vpop.permute.xlu0 %311
        %315 = vset.pattern.permute.xlu0 0
        %316 = vperm.xlu0 %315, %v308
        %v317 = vpop.permute.xlu0 %316
        %v321 = vunpack.c.l.b16 %v289
        %v322 = vunpack.c.l.b16 %v290
        %v323 = vpack.c.b16 %v322, %v321
        %v341 = vunpack.c.l.b16 %v291
        %v342 = vunpack.c.h.b16 %v291
        %v343 = vunpack.c.l.b16 %v292
        %v344 = vunpack.c.h.b16 %v292
        %v345 = vunpack.c.l.b16 %v293
        %v346 = vunpack.c.h.b16 %v293
        %v347 = vunpack.c.l.b16 %v294
        %v348 = vunpack.c.h.b16 %v294
        %v349 = vunpack.c.l.b16 %v295
        %v350 = vunpack.c.h.b16 %v295
        %v351 = vunpack.c.l.b16 %v296
        %v352 = vunpack.c.h.b16 %v296
        %v353 = vunpack.c.l.b16 %v297
        %v354 = vunpack.c.h.b16 %v297
        %v355 = vunpack.c.l.b16 %v298
        %v356 = vunpack.c.h.b16 %v298
        %v357 = vunpack.c.l.b16 %v299
        %v358 = vunpack.c.h.b16 %v299
        %v359 = vunpack.c.l.b16 %v300
        %v360 = vunpack.c.h.b16 %v300
        %v361 = vunpack.c.l.b16 %v301
        %v362 = vunpack.c.h.b16 %v301
        %v363 = vunpack.c.l.b16 %v302
        %v364 = vunpack.c.h.b16 %v302
        %v365 = vunpack.c.l.b16 %v303
        %v366 = vunpack.c.h.b16 %v303
        %v367 = vunpack.c.l.b16 %v304
        %v368 = vunpack.c.h.b16 %v304
        %v369 = vunpack.c.l.b16 %v305
        %v370 = vunpack.c.h.b16 %v305
        %v371 = vunpack.c.l.b16 %v306
        %v372 = vunpack.c.h.b16 %v306
        %v373 = vpack.c.b16 %v343, %v341
        %v374 = vpack.c.b16 %v344, %v342
        %v375 = vpack.c.b16 %v347, %v345
        %v376 = vpack.c.b16 %v348, %v346
        %v377 = vpack.c.b16 %v351, %v349
        %v378 = vpack.c.b16 %v352, %v350
        %v379 = vpack.c.b16 %v355, %v353
        %v380 = vpack.c.b16 %v356, %v354
        %v381 = vpack.c.b16 %v359, %v357
        %v382 = vpack.c.b16 %v360, %v358
        %v383 = vpack.c.b16 %v363, %v361
        %v384 = vpack.c.b16 %v364, %v362
        %v385 = vpack.c.b16 %v367, %v365
        %v386 = vpack.c.b16 %v368, %v366
        %v387 = vpack.c.b16 %v371, %v369
        %v388 = vpack.c.b16 %v372, %v370
        %405 = vmatprep.subr.bf16.mxu0 %v388
        %406 = vmatpush1.bf16.msra.mxu0 %v387
        %407 = vmatprep.subr.bf16.mxu0 %v386
        %408 = vmatpush1.bf16.msra.mxu0 %v385
        %409 = vmatprep.subr.bf16.mxu0 %v384
        %410 = vmatpush1.bf16.msra.mxu0 %v383
        %411 = vmatprep.subr.bf16.mxu0 %v382
        %412 = vmatpush1.bf16.msra.mxu0 %v381
        %413 = vmatprep.subr.bf16.mxu0 %v380
        %414 = vmatpush1.bf16.msra.mxu0 %v379
        %415 = vmatprep.subr.bf16.mxu0 %v378
        %416 = vmatpush1.bf16.msra.mxu0 %v377
        %417 = vmatprep.subr.bf16.mxu0 %v376
        %418 = vmatpush1.bf16.msra.mxu0 %v375
        %419 = vmatprep.subr.bf16.mxu0 %v374
        %420 = vmatpush1.bf16.msra.mxu0 %v373
        %421 = vmatprep.subr.bf16.mxu0 0
        %422 = vmatpush2.bf16.msra.mxu0 0
        %423 = vmatprep.subr.bf16.mxu0 0
        %424 = vmatpush2.bf16.msra.mxu0 0
        %425 = vmatprep.subr.bf16.mxu0 0
        %426 = vmatpush2.bf16.msra.mxu0 0
        %427 = vmatprep.subr.bf16.mxu0 0
        %428 = vmatpush2.bf16.msra.mxu0 0
        %429 = vmatprep.subr.bf16.mxu0 0
        %430 = vmatpush2.bf16.msra.mxu0 0
        %431 = vmatprep.subr.bf16.mxu0 0
        %432 = vmatpush2.bf16.msra.mxu0 0
        %433 = vmatprep.subr.bf16.mxu0 0
        %434 = vmatpush2.bf16.msra.mxu0 0
        %435 = vmatprep.subr.bf16.mxu0 0
        %436 = vmatpush2.bf16.msra.mxu0 0
        %437 = vmatprep.mubr.bf16.mxu0 0
        %438 = vmatmul.mubr.bf16.gmra.mxu0 %v323
        %v439 = vpop.f32.mrf.mxu0
        %v440 = vadd.f32 %v312, %v439
        %v441 = vpop.f32.mrf.mxu0
        %v442 = vadd.f32 %v312, %v441
        %v443 = vpop.f32.mrf.mxu0
        %v444 = vadd.f32 %v317, %v443
        %v445 = vpop.f32.mrf.mxu0
        %v446 = vadd.f32 %v317, %v445
        %447 = vdwg.mxu0
        %448 = vst [vmem:[%s261] sm:$0xff] %v440
        %449 = vst [vmem:[%s261 + $0x8] sm:$0xff] %v442
        %450 = vst [vmem:[%s261 + $0x10] sm:$0xff] %v444
        %451 = vst [vmem:[%s261 + $0x18] sm:$0xff] %v446
        %p452 = scmp.eq.s32.totalorder %s28, 0
        // Predicated region
        $region37: #{tpu_custom_call.1} parent=31 // pred_check
          %p453 = pneg %p452
        $region38: #{tpu_custom_call.1} parent=31 // pred_check_branch
          %455 = sbr.rel (%p453) target = $region40
        $region39: #{tpu_custom_call.1} parent=31 // pred_region
          %vm456 = vcmask 7168
          %457 = vst.msk [vmem:[%s282] sm:$0xff] %vm456, 0.0
          %458 = vst.msk [vmem:[%s282 + $0x8] sm:$0xff] %vm456, 0.0
          %459 = vst.msk [vmem:[%s287] sm:$0xff] %vm456, 0.0
          %460 = vst.msk [vmem:[%s287 + $0x8] sm:$0xff] %vm456, 0.0
        $region40: #{tpu_custom_call.1} parent=31 // pred_fallthru
          _
        %v461 = vld [vmem:[%s282] sm:$0xff]
        %v462 = vld [vmem:[%s282 + $0x8] sm:$0xff]
        %v463 = vadd.f32 %v440, %v442
        %464 = vadd.xlane.f32.xlu0 %v463
        %v465 = vpop.xlane.xlu0 %464
        %v466 = vadd.f32 %v444, %v446
        %467 = vadd.xlane.f32.xlu0 %v466
        %v468 = vpop.xlane.xlu0 %467
        %v469 = vadd.f32 %v461, %v465
        %v470 = vadd.f32 %v462, %v468
        %vm471 = vcmask 7168
        %472 = vst.msk [vmem:[%s282] sm:$0xff] %vm471, %v469
        %473 = vst.msk [vmem:[%s282 + $0x8] sm:$0xff] %vm471, %v470
        %v474 = vld [vmem:[%s287] sm:$0xff]
        %v475 = vld [vmem:[%s287 + $0x8] sm:$0xff]
        %v476 = vmul.f32 %v440, %v440
        %v477 = vmul.f32 %v442, %v442
        %v478 = vmul.f32 %v444, %v444
        %v479 = vmul.f32 %v446, %v446
        %v480 = vadd.f32 %v476, %v477
        %481 = vadd.xlane.f32.xlu0 %v480
        %v482 = vpop.xlane.xlu0 %481
        %v483 = vadd.f32 %v478, %v479
        %484 = vadd.xlane.f32.xlu0 %v483
        %v485 = vpop.xlane.xlu0 %484
        %v486 = vadd.f32 %v474, %v482
        %v487 = vadd.f32 %v475, %v485
        %488 = vst.msk [vmem:[%s287] sm:$0xff] %vm471, %v486
        %489 = vst.msk [vmem:[%s287 + $0x8] sm:$0xff] %vm471, %v487
        %s490 = sand.u32 %s115, 1
        %s491 = scalar_lea.sflag [#allocation4], %s490
        %s492 = sand.u32 %s115, 1
        %s493 = smul.addr %s492, 32
        %s494 = scalar_lea.vmem [#allocation5], %s493
        %p495 = scmp.lt.s32.totalorder %s27, 1
        %s496 = scalar_select %p495, %s27, 1
        %s497 = smul.addr %s496, 2
        %s498 = smul.addr %s497, 8
        %s499 = scalar_lea.vmem %s4, %s498
        %p500 = scmp.lt.s32.totalorder %s27, 1
        %s501 = scalar_select %p500, %s27, 1
        %s502 = smul.addr %s501, 2
        %s503 = smul.addr %s502, 8
        %s504 = scalar_lea.vmem %s5, %s503
        // Predicated region
        $region41: #{tpu_custom_call.1} parent=31 // pred_check
          %p505 = pneg %p125
        $region42: #{tpu_custom_call.1} parent=31 // pred_check_branch
          %507 = sbr.rel (%p505) target = $region44
        $region43: #{tpu_custom_call.1} parent=31 // pred_region
          %s508 = smul.u32 2, %s28
          %s510 = ssub.s32 512, 512
          %511 = vsyncadd %s491, %s510
          %s512 = smul.addr %s27, 8
          %s513 = sadd.s32 %s508, %s512
          %s514 = smul.addr %s513, 128
          %s515 = scalar_lea.hbm %s3, %s514
          %s516 = sshll.u32 %s494, 4
          %s517 = int_to_ptr.vmem [resolvable:$true] %s516
          %522 = dma.vmem_to_hbm [thread:$0]  %s517, 512, %s515, %s491, 256, 512, 16
        $region44: #{tpu_custom_call.1} parent=31 // pred_fallthru
          _
        // Predicated region
        $region45: #{tpu_custom_call.1} parent=31 // pred_check
          %p523 = pneg %p151
        $region46: #{tpu_custom_call.1} parent=31 // pred_check_branch
          %525 = sbr.rel (%p523) target = $region48
        $region47: #{tpu_custom_call.1} parent=31 // pred_region
          _
        $region48: #{tpu_custom_call.1} parent=31 // pred_fallthru
          _
        // Predicated region
        $region49: #{tpu_custom_call.1} parent=31 // pred_check
          %p526 = pneg %p177
        $region50: #{tpu_custom_call.1} parent=31 // pred_check_branch
          %528 = sbr.rel (%p526) target = $region52
        $region51: #{tpu_custom_call.1} parent=31 // pred_region
          _
        $region52: #{tpu_custom_call.1} parent=31 // pred_fallthru
          _
      $region32: #{tpu_custom_call.1} parent=5 // pred_fallthru
        _
      %p529 = scmp.le.s32.totalorder 2, %s18
      // Predicated region
      $region53: #{tpu_custom_call.1} parent=5 // pred_check
        %p530 = pneg %p529
      $region54: #{tpu_custom_call.1} parent=5 // pred_check_branch
        %532 = sbr.rel (%p530) target = $region56
      $region55: #{tpu_custom_call.1} parent=5 // pred_region
        %s533 = ssub.s32 %s18, 2
        // Predicated region
        $region57: #{tpu_custom_call.1} parent=55 // pred_check
          %p534 = pneg %p131
        $region58: #{tpu_custom_call.1} parent=55 // pred_check_branch
          %536 = sbr.rel (%p534) target = $region60
        $region59: #{tpu_custom_call.1} parent=55 // pred_region
          %s537 = sand.u32 %s116, 1
          %s538 = scalar_lea.sflag [#allocation4], %s537
          %s539 = sand.u32 %s116, 1
          %s540 = smul.addr %s539, 32
          %s541 = scalar_lea.vmem [#allocation5], %s540
          %542 = dma.done %s538, 512
        $region60: #{tpu_custom_call.1} parent=55 // pred_fallthru
          _
        // Predicated region
        $region61: #{tpu_custom_call.1} parent=55 // pred_check
          %p543 = pneg %p157
        $region62: #{tpu_custom_call.1} parent=55 // pred_check_branch
          %545 = sbr.rel (%p543) target = $region64
        $region63: #{tpu_custom_call.1} parent=55 // pred_region
          %p546 = scmp.lt.s32.totalorder %s29, 1
          %s547 = scalar_select %p546, %s29, 1
          %s548 = smul.addr %s547, 2
          %s549 = smul.addr %s548, 8
          %s550 = scalar_lea.vmem %s4, %s549
        $region64: #{tpu_custom_call.1} parent=55 // pred_fallthru
          _
        // Predicated region
        $region65: #{tpu_custom_call.1} parent=55 // pred_check
          %p551 = pneg %p183
        $region66: #{tpu_custom_call.1} parent=55 // pred_check_branch
          %553 = sbr.rel (%p551) target = $region68
        $region67: #{tpu_custom_call.1} parent=55 // pred_region
          %p554 = scmp.lt.s32.totalorder %s29, 1
          %s555 = scalar_select %p554, %s29, 1
          %s556 = smul.addr %s555, 2
          %s557 = smul.addr %s556, 8
          %s558 = scalar_lea.vmem %s5, %s557
        $region68: #{tpu_custom_call.1} parent=55 // pred_fallthru
          _
      $region56: #{tpu_custom_call.1} parent=5 // pred_fallthru
        _
    $region6: #{tpu_custom_call.1} parent=1 // loop_footer
      %s22 = sadd.s32 1, %s18
    $region7: #{tpu_custom_call.1} parent=1 // loop_footer_branch
      %17 = sbr.rel target = $region3
    $region8: #{tpu_custom_call.1} parent=1 // loop_exit
      _
    %559 = vsyncpa [#allocation3], 1
    %s560 = scalar_lea.sflag [#allocation3], 1
    %561 = vsyncpa %s560, 1
    %562 = vsyncpa [#allocation4], 1
    %s563 = scalar_lea.sflag [#allocation4], 1
    %564 = vsyncpa %s563, 1

</llo_original>
